<compile_context>
chip_gen: v5e
topology: v5e:2x2
jax: 0.10.0
libtpu: 0.0.40
codegen_flags: <defaults>
</compile_context>

<pallas_src>
import jax
import jax.numpy as jnp
from jax.experimental import pallas as pl
from jax.experimental.pallas import tpu as pltpu


def _round_up(x: int, m: int) -> int:
    return (x + m - 1) // m * m


def _vmem_info():
    """(physical VMEM bytes, usable budget) for the current TPU generation."""
    try:
        phys = int(pltpu.get_tpu_info().vmem_capacity_bytes)
    except Exception:
        phys = 128 << 20
    return phys, int(phys * 0.75)   # leave headroom for compiler scratch


def _choose_block_b(B: int, max_block: int) -> int:
    b8 = _round_up(B, 8)
    if b8 <= 16:
        return b8                                   # tiny batch: one tile
    if b8 <= 2 * max_block:
        # >= 2 grid steps so the "parallel" axis engages both v7x TensorCores.
        return min(max_block, _round_up(-(-b8 // 2), 8))
    return max_block


def _vmem_estimate(block_b, E_pad, L_pad, cbytes, obytes):
    n_out = 2 * E_pad + L_pad
    weights = E_pad * n_out * cbytes + n_out * 4          # resident weights + f32 biases
    io = 2 * block_b * (E_pad * cbytes + n_out * obytes)  # double-buffered x + outputs
    interm = block_b * n_out * 4                          # f32 fused/langid intermediates
    return weights + io + interm + (2 << 20)


# --------------------------------------------------------------------------
# Kernels
# --------------------------------------------------------------------------
def mlp_kernel(x_ref, wml_ref, bml_ref, wid_ref, bid_ref,
               meaning_ref, language_ref, langid_ref):
    """Exact PyTorch semantics: langid is computed from the *stored* language
    embedding (after any out_dtype rounding)."""
    x = x_ref[...]
    e = meaning_ref.shape[-1]        # padded embedding width (multiple of 128)

    # Fused meaning|language projection: [tb, E] @ [E, 2E] -> [tb, 2E] (f32 acc)
    fused = jnp.dot(x, wml_ref[...], preferred_element_type=jnp.float32)
    fused = fused + bml_ref[...]

    meaning_ref[...] = fused[:, :e].astype(meaning_ref.dtype)
    language = fused[:, e:].astype(language_ref.dtype)
    language_ref[...] = language

    langid = jnp.dot(language.astype(wid_ref.dtype), wid_ref[...],
                     preferred_element_type=jnp.float32) + bid_ref[...]
    langid_ref[...] = langid.astype(langid_ref.dtype)


def mlp_kernel_folded(x_ref, w_ref, b_ref,
                      meaning_ref, language_ref, langid_ref):
    """Single fused matmul: [tb, E] @ [E, 2E+L]; langid columns pre-composed."""
    e = meaning_ref.shape[-1]
    fused = jnp.dot(x_ref[...], w_ref[...], preferred_element_type=jnp.float32)
    fused = fused + b_ref[...]
    meaning_ref[...] = fused[:, :e].astype(meaning_ref.dtype)
    language_ref[...] = fused[:, e:2 * e].astype(language_ref.dtype)
    langid_ref[...] = fused[:, 2 * e:].astype(langid_ref.dtype)


# --------------------------------------------------------------------------
# Param preparation (run ONCE per parameter set, cached by the caller)
# --------------------------------------------------------------------------
def prepare_params(params, *, compute_dtype=jnp.float32, fold_langid=False):
    """Transpose / pad / fuse / cast weights once so the per-call path only
    moves x and the outputs through HBM."""
    E = params["wm"].shape[0]
    n_lang = params["wid"].shape[0]
    E_pad = _round_up(E, 128)
    L_pad = _round_up(n_lang, 128)
    pe, pL = E_pad - E, L_pad - n_lang

    wm_t = jnp.pad(params["wm"].T.astype(jnp.float32), ((0, pe), (0, pe)))
    wl_t = jnp.pad(params["wl"].T.astype(jnp.float32), ((0, pe), (0, pe)))
    wid_t = jnp.pad(params["wid"].T.astype(jnp.float32), ((0, pe), (0, pL)))
    bm = jnp.pad(params["bm"].astype(jnp.float32), (0, pe))
    bl = jnp.pad(params["bl"].astype(jnp.float32), (0, pe))
    bid = jnp.pad(params["bid"].astype(jnp.float32), (0, pL))

    prepared = {
        "E": E, "n_lang": n_lang, "E_pad": E_pad, "L_pad": L_pad,
        "compute_dtype": jnp.dtype(compute_dtype), "fold_langid": bool(fold_langid),
    }
    if fold_langid:
        # langid = (x @ Wl^T + bl) @ Wid^T + bid
        #        = x @ (Wl^T @ Wid^T) + (bl @ Wid^T + bid)
        wid_eff = wl_t @ wid_t
        bid_eff = bl @ wid_t + bid
        w = jnp.concatenate([wm_t, wl_t, wid_eff], axis=1).astype(compute_dtype)
        b = jnp.concatenate([bm, bl, bid_eff]).reshape(1, -1).astype(jnp.float32)
        prepared.update(w_fused=w, b_fused=b)
    else:
        wml = jnp.concatenate([wm_t, wl_t], axis=1).astype(compute_dtype)
        bml = jnp.concatenate([bm, bl]).reshape(1, -1).astype(jnp.float32)
        prepared.update(wml=wml, bml=bml,
                        wid=wid_t.astype(compute_dtype),
                        bid=bid.reshape(1, -1).astype(jnp.float32))
    return prepared


# --------------------------------------------------------------------------
# Forward
# --------------------------------------------------------------------------
def mlp_forward(x, prepared, *, block_b=None, out_dtype=None):
    """x: [B, E]. prepared: output of prepare_params()."""
    B, E = x.shape
    assert E == prepared["E"], "embedding size mismatch with prepared params"
    E_pad, L_pad = prepared["E_pad"], prepared["L_pad"]
    n_lang = prepared["n_lang"]
    compute_dtype = prepared["compute_dtype"]
    fold = prepared["fold_langid"]
    out_dtype = jnp.dtype(out_dtype or x.dtype)

    cbytes = compute_dtype.itemsize
    obytes = out_dtype.itemsize

    phys_vmem, vmem_budget = _vmem_info()
    small_vmem = phys_vmem <= (64 << 20)          # v7x: 64 MiB per TensorCore
    if block_b is None:
        if compute_dtype == jnp.dtype(jnp.bfloat16):
            max_block = 512 if small_vmem else 1024
        else:
            max_block = 256 if small_vmem else 512
        block_b = _choose_block_b(B, max_block)
    block_b = max(8, _round_up(block_b, 8))

    # Shrink the batch tile until the real footprint (weights + double-buffered
    # x/outputs + materialized f32 intermediates) fits in the VMEM budget.
    while block_b > 8 and _vmem_estimate(block_b, E_pad, L_pad,
                                         cbytes, obytes) > vmem_budget:
        block_b = max(8, _round_up(block_b // 2, 8))
    vmem_est = _vmem_estimate(block_b, E_pad, L_pad, cbytes, obytes)
    vmem_limit = int(min(max(2 * vmem_est, 32 << 20), vmem_budget))
    # TODO(synk): if the fused weight alone exceeds the VMEM budget
    # (e.g. f32 E >= ~2048 on v7x), add a K/N grid with an f32 accumulator
    # scratch (or cast weights to bf16) instead of keeping it fully resident.

    B_pad = _round_up(max(B, 8), block_b)
    x_p = jnp.pad(x, ((0, B_pad - B), (0, E_pad - E))).astype(compute_dtype)
    grid = (pl.cdiv(B_pad, block_b),)

    out_shapes = (
        jax.ShapeDtypeStruct((B_pad, E_pad), out_dtype),   # meaning_embedding
        jax.ShapeDtypeStruct((B_pad, E_pad), out_dtype),   # language_embedding
        jax.ShapeDtypeStruct((B_pad, L_pad), out_dtype),   # language_identification
    )
    batch_tile = lambda i: (i, 0)
    const = lambda i: (0, 0)
    single = pl.Buffered(1)   # constant-index blocks: no point double-buffering

    out_specs = [
        pl.BlockSpec((block_b, E_pad), batch_tile),
        pl.BlockSpec((block_b, E_pad), batch_tile),
        pl.BlockSpec((block_b, L_pad), batch_tile),
    ]
    cparams = pltpu.CompilerParams(dimension_semantics=("parallel",),
                                   vmem_limit_bytes=vmem_limit)

    if fold:
        n_out = 2 * E_pad + L_pad
        meaning, language, langid = pl.pallas_call(
            mlp_kernel_folded,
            out_shape=out_shapes,
            grid_spec=pltpu.PrefetchScalarGridSpec(
                num_scalar_prefetch=0,
                grid=grid,
                in_specs=[
                    pl.BlockSpec((block_b, E_pad), batch_tile),                 # x
                    pl.BlockSpec((E_pad, n_out), const, pipeline_mode=single),  # Wm|Wl|Wid_eff
                    pl.BlockSpec((1, n_out), const, pipeline_mode=single),      # bm|bl|bid_eff
                ],
                out_specs=out_specs,
            ),
            compiler_params=cparams,
        )(x_p, prepared["w_fused"], prepared["b_fused"])
    else:
        meaning, language, langid = pl.pallas_call(
            mlp_kernel,
            out_shape=out_shapes,
            grid_spec=pltpu.PrefetchScalarGridSpec(
                num_scalar_prefetch=0,
                grid=grid,
                in_specs=[
                    pl.BlockSpec((block_b, E_pad), batch_tile),                     # x
                    pl.BlockSpec((E_pad, 2 * E_pad), const, pipeline_mode=single),  # Wm^T|Wl^T
                    pl.BlockSpec((1, 2 * E_pad), const, pipeline_mode=single),      # bm|bl
                    pl.BlockSpec((E_pad, L_pad), const, pipeline_mode=single),      # Wid^T
                    pl.BlockSpec((1, L_pad), const, pipeline_mode=single),          # bid
                ],
                out_specs=out_specs,
            ),
            compiler_params=cparams,
        )(x_p, prepared["wml"], prepared["bml"], prepared["wid"], prepared["bid"])

    # Slice padding away (padded rows/cols were zero-filled, never real data).
    return (meaning[:B, :E], language[:B, :E], langid[:B, :n_lang])


# --------------------------------------------------------------------------
# Reference / test harness
# --------------------------------------------------------------------------
def init_params(key, embedding_size, n_languages, dtype=jnp.float32):
    """Deterministic synthetic init (nn.Linear-like uniform fan-in)."""
    ks = jax.random.split(key, 6)
    E, L = embedding_size, n_languages
    bound = 1.0 / (E ** 0.5)
    u = lambda k, shp: jax.random.uniform(k, shp, dtype, -bound, bound)
    return {
        "wm": u(ks[0], (E, E)),  "bm": u(ks[1], (E,)),
        "wl": u(ks[2], (E, E)),  "bl": u(ks[3], (E,)),
        "wid": u(ks[4], (L, E)), "bid": u(ks[5], (L,)),
    }


def mlp_reference(x, p):
    meaning = x @ p["wm"].T + p["bm"]
    language = x @ p["wl"].T + p["bl"]
    langid = language @ p["wid"].T + p["bid"]
    return meaning, language, langid


def _check(outs, refs, atol, rtol):
    for o, r in zip(outs, refs):
        assert o.shape == r.shape and o.dtype == r.dtype
        assert jnp.allclose(o, r, atol=atol, rtol=rtol), "mismatch vs reference"


if __name__ == "__main__":
    key = jax.random.PRNGKey(0)
    k1, k2, k3, k4 = jax.random.split(key, 4)

    # Case 1: tiny shapes from the original demo (f32, single batch tile).
    x = jax.random.normal(k1, (8, 32), jnp.float32)
    p = init_params(k2, 32, 4)
    prep = prepare_params(p)                       # weight prep happens ONCE here
    outs = jax.block_until_ready(mlp_forward(x, prep))
    _check(outs, mlp_reference(x, p), atol=1e-4, rtol=1e-4)

    # Case 2: batch large enough for a multi-step "parallel" grid (f32).
    x2 = jax.random.normal(k3, (256, 128), jnp.float32)
    p2 = init_params(k4, 128, 4)
    prep2 = prepare_params(p2)
    outs2 = jax.block_until_ready(mlp_forward(x2, prep2))
    _check(outs2, mlp_reference(x2, p2), atol=1e-4, rtol=1e-4)

    # Case 3: bf16 weights/activations with f32 accumulation (loose check).
    prep2_bf16 = prepare_params(p2, compute_dtype=jnp.bfloat16)
    outs3 = jax.block_until_ready(mlp_forward(x2, prep2_bf16))
    _check(outs3, mlp_reference(x2, p2), atol=1e-1, rtol=1e-1)

    # Case 4: folded langid projection (single fused matmul), f32.
    prep2_fold = prepare_params(p2, fold_langid=True)
    outs4 = jax.block_until_ready(mlp_forward(x2, prep2_fold))
    _check(outs4, mlp_reference(x2, p2), atol=1e-3, rtol=1e-3)

    print("KERNEL_OK")
</pallas_src>

<mosaic_0001>
module attributes {stable_mosaic.version = 11 : i64} {
  func.func @mlp_kernel(%arg0: i32, %arg1: memref<8x128xf32, #tpu.memory_space<vmem>>, %arg2: memref<128x256xf32, #tpu.memory_space<vmem>>, %arg3: memref<1x256xf32, #tpu.memory_space<vmem>>, %arg4: memref<128x128xf32, #tpu.memory_space<vmem>>, %arg5: memref<1x128xf32, #tpu.memory_space<vmem>>, %arg6: memref<8x128xf32, #tpu.memory_space<vmem>>, %arg7: memref<8x128xf32, #tpu.memory_space<vmem>>, %arg8: memref<8x128xf32, #tpu.memory_space<vmem>>) attributes {dimension_semantics = [#tpu.dimension_semantics<parallel>], iteration_bounds = array<i64: 1>, scalar_prefetch = 0 : i64, scratch_operands = 0 : i64, tpu.core_type = #tpu.core_type<tc>, window_params = [{transform_indices = @transform_0, window_bounds = array<i64: 8, 128>}, {pipeline_mode = #tpu.pipeline_mode<synchronous>, transform_indices = @transform_1, window_bounds = array<i64: 128, 256>}, {pipeline_mode = #tpu.pipeline_mode<synchronous>, transform_indices = @transform_2, window_bounds = array<i64: 1, 256>}, {pipeline_mode = #tpu.pipeline_mode<synchronous>, transform_indices = @transform_3, window_bounds = array<i64: 128, 128>}, {pipeline_mode = #tpu.pipeline_mode<synchronous>, transform_indices = @transform_4, window_bounds = array<i64: 1, 128>}, {transform_indices = @transform_5, window_bounds = array<i64: 8, 128>}, {transform_indices = @transform_6, window_bounds = array<i64: 8, 128>}, {transform_indices = @transform_7, window_bounds = array<i64: 8, 128>}]} {
    %c0 = arith.constant 0 : index
    %c0_0 = arith.constant 0 : index
    %0 = vector.load %arg1[%c0, %c0_0] : memref<8x128xf32, #tpu.memory_space<vmem>>, vector<8x128xf32>
    %c0_1 = arith.constant 0 : index
    %c0_2 = arith.constant 0 : index
    %1 = vector.load %arg2[%c0_1, %c0_2] : memref<128x256xf32, #tpu.memory_space<vmem>>, vector<128x256xf32>
    %cst = arith.constant dense<0.000000e+00> : vector<8x256xf32>
    %2 = tpu.matmul %0, %1, %cst {dimension_numbers = #tpu.dot_dimension_numbers<[1], [0], [0], [1], [0, 0, 1, 1], [], []>} : vector<8x128xf32>, vector<128x256xf32>, vector<8x256xf32> -> vector<8x256xf32>
    %c0_3 = arith.constant 0 : index
    %c0_4 = arith.constant 0 : index
    %3 = vector.load %arg3[%c0_3, %c0_4] : memref<1x256xf32, #tpu.memory_space<vmem>>, vector<1x256xf32>
    %4 = vector.broadcast %3 : vector<1x256xf32> to vector<8x256xf32>
    %5 = arith.addf %2, %4 : vector<8x256xf32>
    %6 = vector.extract_strided_slice %5 {offsets = [0, 0], sizes = [8, 128], strides = [1, 1]} : vector<8x256xf32> to vector<8x128xf32>
    %c0_5 = arith.constant 0 : index
    %c0_6 = arith.constant 0 : index
    %7 = vector.load %arg6[%c0_5, %c0_6] : memref<8x128xf32, #tpu.memory_space<vmem>>, vector<8x128xf32>
    tpu.vector_store %arg6[%c0_5, %c0_6], %6 {strides = array<i32>} : memref<8x128xf32, #tpu.memory_space<vmem>>, vector<8x128xf32>,
    %8 = vector.extract_strided_slice %5 {offsets = [0, 128], sizes = [8, 128], strides = [1, 1]} : vector<8x256xf32> to vector<8x128xf32>
    %c0_7 = arith.constant 0 : index
    %c0_8 = arith.constant 0 : index
    %9 = vector.load %arg7[%c0_7, %c0_8] : memref<8x128xf32, #tpu.memory_space<vmem>>, vector<8x128xf32>
    tpu.vector_store %arg7[%c0_7, %c0_8], %8 {strides = array<i32>} : memref<8x128xf32, #tpu.memory_space<vmem>>, vector<8x128xf32>,
    %c0_9 = arith.constant 0 : index
    %c0_10 = arith.constant 0 : index
    %10 = vector.load %arg4[%c0_9, %c0_10] : memref<128x128xf32, #tpu.memory_space<vmem>>, vector<128x128xf32>
    %cst_11 = arith.constant dense<0.000000e+00> : vector<8x128xf32>
    %11 = tpu.matmul %8, %10, %cst_11 {dimension_numbers = #tpu.dot_dimension_numbers<[1], [0], [0], [1], [0, 0, 1, 1], [], []>} : vector<8x128xf32>, vector<128x128xf32>, vector<8x128xf32> -> vector<8x128xf32>
    %c0_12 = arith.constant 0 : index
    %c0_13 = arith.constant 0 : index
    %12 = vector.load %arg5[%c0_12, %c0_13] : memref<1x128xf32, #tpu.memory_space<vmem>>, vector<1x128xf32>
    %13 = vector.broadcast %12 : vector<1x128xf32> to vector<8x128xf32>
    %14 = arith.addf %11, %13 : vector<8x128xf32>
    %c0_14 = arith.constant 0 : index
    %c0_15 = arith.constant 0 : index
    %15 = vector.load %arg8[%c0_14, %c0_15] : memref<8x128xf32, #tpu.memory_space<vmem>>, vector<8x128xf32>
    tpu.vector_store %arg8[%c0_14, %c0_15], %14 {strides = array<i32>} : memref<8x128xf32, #tpu.memory_space<vmem>>, vector<8x128xf32>,
    return
  }
  func.func @transform_0(%arg0: i32) -> (i32, i32) {
    %c0_i32 = arith.constant 0 : i32
    %c0_i32_0 = arith.constant 0 : i32
    return %arg0, %c0_i32 : i32, i32
  }
  func.func @transform_1(%arg0: i32) -> (i32, i32) {
    %c0_i32 = arith.constant 0 : i32
    %c0_i32_0 = arith.constant 0 : i32
    %c0_i32_1 = arith.constant 0 : i32
    return %c0_i32, %c0_i32_0 : i32, i32
  }
  func.func @transform_2(%arg0: i32) -> (i32, i32) {
    %c0_i32 = arith.constant 0 : i32
    %c0_i32_0 = arith.constant 0 : i32
    %c0_i32_1 = arith.constant 0 : i32
    return %c0_i32, %c0_i32_0 : i32, i32
  }
  func.func @transform_3(%arg0: i32) -> (i32, i32) {
    %c0_i32 = arith.constant 0 : i32
    %c0_i32_0 = arith.constant 0 : i32
    %c0_i32_1 = arith.constant 0 : i32
    return %c0_i32, %c0_i32_0 : i32, i32
  }
  func.func @transform_4(%arg0: i32) -> (i32, i32) {
    %c0_i32 = arith.constant 0 : i32
    %c0_i32_0 = arith.constant 0 : i32
    %c0_i32_1 = arith.constant 0 : i32
    return %c0_i32, %c0_i32_0 : i32, i32
  }
  func.func @transform_5(%arg0: i32) -> (i32, i32) {
    %c0_i32 = arith.constant 0 : i32
    %c0_i32_0 = arith.constant 0 : i32
    return %arg0, %c0_i32 : i32, i32
  }
  func.func @transform_6(%arg0: i32) -> (i32, i32) {
    %c0_i32 = arith.constant 0 : i32
    %c0_i32_0 = arith.constant 0 : i32
    return %arg0, %c0_i32 : i32, i32
  }
  func.func @transform_7(%arg0: i32) -> (i32, i32) {
    %c0_i32 = arith.constant 0 : i32
    %c0_i32_0 = arith.constant 0 : i32
    return %arg0, %c0_i32 : i32, i32
  }
}

</mosaic_0001>

<llo_original>
// kernel: tpu_custom_call.1
$region0: #{tpu_custom_call.1}
  #allocation0 [shape = 'u32[]', space=smem, size = 0x4, offset = 0x4, fixed_abs, tag = 'smem constant byte address 0x4 - core index']
  #allocation1 [shape = 'u32[72,128]{1,0:T(1,128)}', space=vmem, size = 0x9000, scoped, tag = 'internal scratch']
  %s0 = inlined_call_operand.hbm [shape: f32[8,128], index: 0, kind: input, shape index: {}]
  %s1 = inlined_call_operand.hbm [shape: f32[128,256], index: 1, kind: input, shape index: {}]
  %s2 = inlined_call_operand.hbm [shape: f32[1,256], index: 2, kind: input, shape index: {}]
  %s3 = inlined_call_operand.hbm [shape: f32[128,128], index: 3, kind: input, shape index: {}]
  %s4 = inlined_call_operand.vmem [shape: f32[1,128], index: 4, kind: input, shape index: {}]
  %s5 = inlined_call_operand.hbm [shape: f32[8,128], index: 5, kind: output, shape index: {0}]
  %s6 = inlined_call_operand.hbm [shape: f32[8,128], index: 6, kind: output, shape index: {1}]
  %s7 = inlined_call_operand.hbm [shape: f32[8,128], index: 7, kind: output, shape index: {2}]
  %8 = xla_tuple %s5, %s6, %s7
  %s9 = sld [smem:[#allocation0]]
  $region62: #{tpu_custom_call.1} parent=0
    _
  %s11 = ssub.s32 1, %s9
  %s12 = scalar_select 0, %s11, %s9
  $region1: #{tpu_custom_call.1} parent=0
    #allocation2 [shape = 'u8[4096]{0}', space=vmem, size = 0x1000, scoped, tag = 'input window, operand 0, single buffered']
    #allocation3 [shape = 's32[1]{0}', space=sflag, size = 0x4, scoped, tag = 'scoped memory for tpu_custom_call.1']
    #allocation4 [shape = 's32[1]{0}', space=sflag, size = 0x4, scoped, tag = 'scoped memory for tpu_custom_call.1']
    #allocation5 [shape = 'u8[131072]{0}', space=vmem, size = 0x20000, scoped, tag = 'input window, operand 1, single buffered']
    #allocation6 [shape = 's32[1]{0}', space=sflag, size = 0x4, scoped, tag = 'scoped memory for tpu_custom_call.1']
    #allocation7 [shape = 'u8[1024]{0}', space=vmem, size = 0x400, scoped, tag = 'input window, operand 2, single buffered']
    #allocation8 [shape = 'u8[65536]{0}', space=vmem, size = 0x10000, scoped, tag = 'input window, operand 3, single buffered']
    #allocation9 [shape = 's32[1]{0}', space=sflag, size = 0x4, scoped, tag = 'scoped memory for tpu_custom_call.1']
    #allocation10 [shape = 'u8[4096]{0}', space=vmem, size = 0x1000, scoped, tag = 'output window, operand 0, single buffered']
    #allocation11 [shape = 'u8[4096]{0}', space=vmem, size = 0x1000, scoped, tag = 'output window, operand 1, single buffered']
    #allocation12 [shape = 's32[1]{0}', space=sflag, size = 0x4, scoped, tag = 'scoped memory for tpu_custom_call.1']
    #allocation13 [shape = 'u8[4096]{0}', space=vmem, size = 0x1000, scoped, tag = 'output window, operand 2, single buffered']
    %13 = vsyncpa [#allocation3], 0
    %14 = vsyncpa [#allocation6], 0
    %15 = vsyncpa [#allocation9], 0
    %16 = vsyncpa [#allocation4], 0
    %17 = vsyncpa [#allocation12], 0
    // Predicated region
    $region2: #{tpu_custom_call.1} parent=1 // pred_check
      _
    $region3: #{tpu_custom_call.1} parent=1 // pred_check_branch
      %19 = sbr.rel (0) target = $region5
    $region4: #{tpu_custom_call.1} parent=1 // pred_region
      %21 = vsyncadd [#allocation3], 0
      %s23 = sshll.u32 %s0, 4
      %s24 = int_to_ptr.hbm [resolvable:$true] %s23
      %s25 = sshll.u32 [#allocation2], 4
      %s26 = int_to_ptr.vmem [resolvable:$true] %s25
      %28 = dma.hbm_to_vmem [thread:$0]  %s24, 128, %s26, [#allocation3]
    $region5: #{tpu_custom_call.1} parent=1 // pred_fallthru
      _
    // Predicated region
    $region6: #{tpu_custom_call.1} parent=1 // pred_check
      _
    $region7: #{tpu_custom_call.1} parent=1 // pred_check_branch
      %30 = sbr.rel (0) target = $region9
    $region8: #{tpu_custom_call.1} parent=1 // pred_region
      %32 = vsyncadd [#allocation6], 0
      %s33 = sshll.u32 %s1, 4
      %s34 = int_to_ptr.hbm [resolvable:$true] %s33
      %s35 = sshll.u32 [#allocation5], 4
      %s36 = int_to_ptr.vmem [resolvable:$true] %s35
      %41 = dma.hbm_to_vmem [thread:$0]  %s34, 4096, %s36, [#allocation6], 256, 256, 16
    $region9: #{tpu_custom_call.1} parent=1 // pred_fallthru
      _
    // Predicated region
    $region10: #{tpu_custom_call.1} parent=1 // pred_check
      _
    $region11: #{tpu_custom_call.1} parent=1 // pred_check_branch
      %43 = sbr.rel (0) target = $region13
    $region12: #{tpu_custom_call.1} parent=1 // pred_region
      %45 = vsyncadd [#allocation6], 0
      %s47 = sshll.u32 %s2, 4
      %s48 = int_to_ptr.hbm [resolvable:$true] %s47
      %s49 = sshll.u32 [#allocation7], 4
      %s50 = int_to_ptr.vmem [resolvable:$true] %s49
      %52 = dma.hbm_to_vmem [thread:$0]  %s48, 32, %s50, [#allocation6]
    $region13: #{tpu_custom_call.1} parent=1 // pred_fallthru
      _
    // Predicated region
    $region14: #{tpu_custom_call.1} parent=1 // pred_check
      _
    $region15: #{tpu_custom_call.1} parent=1 // pred_check_branch
      %54 = sbr.rel (0) target = $region17
    $region16: #{tpu_custom_call.1} parent=1 // pred_region
      %56 = vsyncadd [#allocation9], 0
      %s57 = sshll.u32 %s3, 4
      %s58 = int_to_ptr.hbm [resolvable:$true] %s57
      %s59 = sshll.u32 [#allocation8], 4
      %s60 = int_to_ptr.vmem [resolvable:$true] %s59
      %65 = dma.hbm_to_vmem [thread:$0]  %s58, 2048, %s60, [#allocation9], 128, 128, 8
    $region17: #{tpu_custom_call.1} parent=1 // pred_fallthru
      _
    // Predicated region
    $region18: #{tpu_custom_call.1} parent=1 // pred_check
      _
    $region19: #{tpu_custom_call.1} parent=1 // pred_check_branch
      %67 = sbr.rel (0) target = $region21
    $region20: #{tpu_custom_call.1} parent=1 // pred_region
      _
    $region21: #{tpu_custom_call.1} parent=1 // pred_fallthru
      _
    // Predicated region
    $region22: #{tpu_custom_call.1} parent=1 // pred_check
      _
    $region23: #{tpu_custom_call.1} parent=1 // pred_check_branch
      %69 = sbr.rel (0) target = $region25
    $region24: #{tpu_custom_call.1} parent=1 // pred_region
      %71 = dma.done [#allocation3], 128
    $region25: #{tpu_custom_call.1} parent=1 // pred_fallthru
      _
    // Predicated region
    $region26: #{tpu_custom_call.1} parent=1 // pred_check
      _
    $region27: #{tpu_custom_call.1} parent=1 // pred_check_branch
      %73 = sbr.rel (0) target = $region29
    $region28: #{tpu_custom_call.1} parent=1 // pred_region
      %75 = dma.done [#allocation6], 4096
    $region29: #{tpu_custom_call.1} parent=1 // pred_fallthru
      _
    // Predicated region
    $region30: #{tpu_custom_call.1} parent=1 // pred_check
      _
    $region31: #{tpu_custom_call.1} parent=1 // pred_check_branch
      %77 = sbr.rel (0) target = $region33
    $region32: #{tpu_custom_call.1} parent=1 // pred_region
      %79 = dma.done [#allocation6], 32
    $region33: #{tpu_custom_call.1} parent=1 // pred_fallthru
      _
    // Predicated region
    $region34: #{tpu_custom_call.1} parent=1 // pred_check
      _
    $region35: #{tpu_custom_call.1} parent=1 // pred_check_branch
      %81 = sbr.rel (0) target = $region37
    $region36: #{tpu_custom_call.1} parent=1 // pred_region
      %83 = dma.done [#allocation9], 2048
    $region37: #{tpu_custom_call.1} parent=1 // pred_fallthru
      _
    %v84 = vld [vmem:[#allocation2] sm:$0xff]
    %v85 = vld [vmem:[#allocation5] sm:$0xff]
    %v86 = vld [vmem:[#allocation5 + $0x8] sm:$0xff]
    %v87 = vld [vmem:[#allocation5 + $0x10] sm:$0xff]
    %v88 = vld [vmem:[#allocation5 + $0x18] sm:$0xff]
    %v89 = vld [vmem:[#allocation5 + $0x20] sm:$0xff]
    %v90 = vld [vmem:[#allocation5 + $0x28] sm:$0xff]
    %v91 = vld [vmem:[#allocation5 + $0x30] sm:$0xff]
    %v92 = vld [vmem:[#allocation5 + $0x38] sm:$0xff]
    %v93 = vld [vmem:[#allocation5 + $0x40] sm:$0xff]
    %v94 = vld [vmem:[#allocation5 + $0x48] sm:$0xff]
    %v95 = vld [vmem:[#allocation5 + $0x50] sm:$0xff]
    %v96 = vld [vmem:[#allocation5 + $0x58] sm:$0xff]
    %v97 = vld [vmem:[#allocation5 + $0x60] sm:$0xff]
    %v98 = vld [vmem:[#allocation5 + $0x68] sm:$0xff]
    %v99 = vld [vmem:[#allocation5 + $0x70] sm:$0xff]
    %v100 = vld [vmem:[#allocation5 + $0x78] sm:$0xff]
    %v101 = vld [vmem:[#allocation5 + $0x80] sm:$0xff]
    %v102 = vld [vmem:[#allocation5 + $0x88] sm:$0xff]
    %v103 = vld [vmem:[#allocation5 + $0x90] sm:$0xff]
    %v104 = vld [vmem:[#allocation5 + $0x98] sm:$0xff]
    %v105 = vld [vmem:[#allocation5 + $0xa0] sm:$0xff]
    %v106 = vld [vmem:[#allocation5 + $0xa8] sm:$0xff]
    %v107 = vld [vmem:[#allocation5 + $0xb0] sm:$0xff]
    %v108 = vld [vmem:[#allocation5 + $0xb8] sm:$0xff]
    %v109 = vld [vmem:[#allocation5 + $0xc0] sm:$0xff]
    %v110 = vld [vmem:[#allocation5 + $0xc8] sm:$0xff]
    %v111 = vld [vmem:[#allocation5 + $0xd0] sm:$0xff]
    %v112 = vld [vmem:[#allocation5 + $0xd8] sm:$0xff]
    %v113 = vld [vmem:[#allocation5 + $0xe0] sm:$0xff]
    %v114 = vld [vmem:[#allocation5 + $0xe8] sm:$0xff]
    %v115 = vld [vmem:[#allocation5 + $0xf0] sm:$0xff]
    %v116 = vld [vmem:[#allocation5 + $0xf8] sm:$0xff]
    %v117 = vld [vmem:[#allocation7] sm:$0x3]
    %v119 = vperm.slane %v117, 0
    %v120 = vperm.slane %v117, 1
    %123 = vmatpush.msra.mxu0 %v115
    %124 = vmatpush.msra.mxu0 %v113
    %125 = vmatpush.msra.mxu0 %v111
    %126 = vmatpush.msra.mxu0 %v109
    %127 = vmatpush.msra.mxu0 %v107
    %128 = vmatpush.msra.mxu0 %v105
    %129 = vmatpush.msra.mxu0 %v103
    %130 = vmatpush.msra.mxu0 %v101
    %131 = vmatpush.msra.mxu0 %v99
    %132 = vmatpush.msra.mxu0 %v97
    %133 = vmatpush.msra.mxu0 %v95
    %134 = vmatpush.msra.mxu0 %v93
    %135 = vmatpush.msra.mxu0 %v91
    %136 = vmatpush.msra.mxu0 %v89
    %137 = vmatpush.msra.mxu0 %v87
    %138 = vmatpush.msra.mxu0 %v85
    %139 = vmatmul.f32.gmra.mxu0 %v84
    %v140 = vpop.f32.mrf.mxu0
    %v141 = vadd.f32 %v119, %v140
    %142 = vdwg.mxu0
    %143 = vmatpush.msra.mxu0 %v116
    %144 = vmatpush.msra.mxu0 %v114
    %145 = vmatpush.msra.mxu0 %v112
    %146 = vmatpush.msra.mxu0 %v110
    %147 = vmatpush.msra.mxu0 %v108
    %148 = vmatpush.msra.mxu0 %v106
    %149 = vmatpush.msra.mxu0 %v104
    %150 = vmatpush.msra.mxu0 %v102
    %151 = vmatpush.msra.mxu0 %v100
    %152 = vmatpush.msra.mxu0 %v98
    %153 = vmatpush.msra.mxu0 %v96
    %154 = vmatpush.msra.mxu0 %v94
    %155 = vmatpush.msra.mxu0 %v92
    %156 = vmatpush.msra.mxu0 %v90
    %157 = vmatpush.msra.mxu0 %v88
    %158 = vmatpush.msra.mxu0 %v86
    %159 = vmatmul.f32.gmra.mxu0 %v84
    %v160 = vpop.f32.mrf.mxu0
    %v161 = vadd.f32 %v120, %v160
    %162 = vdwg.mxu0
    %163 = vst [vmem:[#allocation10] sm:$0xff] %v141
    %164 = vst [vmem:[#allocation11] sm:$0xff] %v161
    %v165 = vld [vmem:[#allocation8] sm:$0xff]
    %v166 = vld [vmem:[#allocation8 + $0x8] sm:$0xff]
    %v167 = vld [vmem:[#allocation8 + $0x10] sm:$0xff]
    %v168 = vld [vmem:[#allocation8 + $0x18] sm:$0xff]
    %v169 = vld [vmem:[#allocation8 + $0x20] sm:$0xff]
    %v170 = vld [vmem:[#allocation8 + $0x28] sm:$0xff]
    %v171 = vld [vmem:[#allocation8 + $0x30] sm:$0xff]
    %v172 = vld [vmem:[#allocation8 + $0x38] sm:$0xff]
    %v173 = vld [vmem:[#allocation8 + $0x40] sm:$0xff]
    %v174 = vld [vmem:[#allocation8 + $0x48] sm:$0xff]
    %v175 = vld [vmem:[#allocation8 + $0x50] sm:$0xff]
    %v176 = vld [vmem:[#allocation8 + $0x58] sm:$0xff]
    %v177 = vld [vmem:[#allocation8 + $0x60] sm:$0xff]
    %v178 = vld [vmem:[#allocation8 + $0x68] sm:$0xff]
    %v179 = vld [vmem:[#allocation8 + $0x70] sm:$0xff]
    %v180 = vld [vmem:[#allocation8 + $0x78] sm:$0xff]
    %v181 = vld [vmem:[%s4] sm:$0x1]
    %v183 = vperm.slane %v181, 0
    %185 = vmatpush.msra.mxu0 %v180
    %186 = vmatpush.msra.mxu0 %v179
    %187 = vmatpush.msra.mxu0 %v178
    %188 = vmatpush.msra.mxu0 %v177
    %189 = vmatpush.msra.mxu0 %v176
    %190 = vmatpush.msra.mxu0 %v175
    %191 = vmatpush.msra.mxu0 %v174
    %192 = vmatpush.msra.mxu0 %v173
    %193 = vmatpush.msra.mxu0 %v172
    %194 = vmatpush.msra.mxu0 %v171
    %195 = vmatpush.msra.mxu0 %v170
    %196 = vmatpush.msra.mxu0 %v169
    %197 = vmatpush.msra.mxu0 %v168
    %198 = vmatpush.msra.mxu0 %v167
    %199 = vmatpush.msra.mxu0 %v166
    %200 = vmatpush.msra.mxu0 %v165
    %201 = vmatmul.f32.gmra.mxu0 %v161
    %v202 = vpop.f32.mrf.mxu0
    %v203 = vadd.f32 %v183, %v202
    %204 = vdwg.mxu0
    %205 = vst [vmem:[#allocation13] sm:$0xff] %v203
    // Predicated region
    $region38: #{tpu_custom_call.1} parent=1 // pred_check
      _
    $region39: #{tpu_custom_call.1} parent=1 // pred_check_branch
      %207 = sbr.rel (0) target = $region41
    $region40: #{tpu_custom_call.1} parent=1 // pred_region
      %209 = vsyncadd [#allocation4], 0
      %s211 = sshll.u32 [#allocation10], 4
      %s212 = int_to_ptr.vmem [resolvable:$true] %s211
      %s213 = sshll.u32 %s5, 4
      %s214 = int_to_ptr.hbm [resolvable:$true] %s213
      %216 = dma.vmem_to_hbm [thread:$0]  %s212, 128, %s214, [#allocation4]
    $region41: #{tpu_custom_call.1} parent=1 // pred_fallthru
      _
    // Predicated region
    $region42: #{tpu_custom_call.1} parent=1 // pred_check
      _
    $region43: #{tpu_custom_call.1} parent=1 // pred_check_branch
      %218 = sbr.rel (0) target = $region45
    $region44: #{tpu_custom_call.1} parent=1 // pred_region
      %220 = vsyncadd [#allocation12], 0
      %s222 = sshll.u32 [#allocation11], 4
      %s223 = int_to_ptr.vmem [resolvable:$true] %s222
      %s224 = sshll.u32 %s6, 4
      %s225 = int_to_ptr.hbm [resolvable:$true] %s224
      %227 = dma.vmem_to_hbm [thread:$0]  %s223, 128, %s225, [#allocation12]
    $region45: #{tpu_custom_call.1} parent=1 // pred_fallthru
      _
    // Predicated region
    $region46: #{tpu_custom_call.1} parent=1 // pred_check
      _
    $region47: #{tpu_custom_call.1} parent=1 // pred_check_branch
      %229 = sbr.rel (0) target = $region49
    $region48: #{tpu_custom_call.1} parent=1 // pred_region
      %231 = vsyncadd [#allocation12], 0
      %s233 = sshll.u32 [#allocation13], 4
      %s234 = int_to_ptr.vmem [resolvable:$true] %s233
      %s235 = sshll.u32 %s7, 4
      %s236 = int_to_ptr.hbm [resolvable:$true] %s235
      %238 = dma.vmem_to_hbm [thread:$0]  %s234, 128, %s236, [#allocation12]
    $region49: #{tpu_custom_call.1} parent=1 // pred_fallthru
      _
    // Predicated region
    $region50: #{tpu_custom_call.1} parent=1 // pred_check
      _
    $region51: #{tpu_custom_call.1} parent=1 // pred_check_branch
      %240 = sbr.rel (0) target = $region53
    $region52: #{tpu_custom_call.1} parent=1 // pred_region
      %242 = dma.done [#allocation4], 128
    $region53: #{tpu_custom_call.1} parent=1 // pred_fallthru
      _
    // Predicated region
    $region54: #{tpu_custom_call.1} parent=1 // pred_check
      _
    $region55: #{tpu_custom_call.1} parent=1 // pred_check_branch
      %244 = sbr.rel (0) target = $region57
    $region56: #{tpu_custom_call.1} parent=1 // pred_region
      %246 = dma.done [#allocation12], 128
    $region57: #{tpu_custom_call.1} parent=1 // pred_fallthru
      _
    // Predicated region
    $region58: #{tpu_custom_call.1} parent=1 // pred_check
      _
    $region59: #{tpu_custom_call.1} parent=1 // pred_check_branch
      %248 = sbr.rel (0) target = $region61
    $region60: #{tpu_custom_call.1} parent=1 // pred_region
      %250 = dma.done [#allocation12], 128
    $region61: #{tpu_custom_call.1} parent=1 // pred_fallthru
      _
    %251 = vsyncpa [#allocation3], 1
    %252 = vsyncpa [#allocation6], 1
    %253 = vsyncpa [#allocation9], 1
    %254 = vsyncpa [#allocation4], 1
    %255 = vsyncpa [#allocation12], 1

</llo_original>
